<compile_context>
chip_gen: v6e
topology: v6e:2x2x1
jax: 0.10.0
libtpu: 0.0.40
codegen_flags: <defaults>
</compile_context>

<pallas_src>
import functools
import math

import jax
import jax.numpy as jnp
from jax.experimental import pallas as pl
from jax.experimental.pallas import tpu as pltpu

STD = 0.5                                                           # fixed action std
LOGP_CONST = float(-math.log(STD) - 0.5 * math.log(2.0 * math.pi))  # per-dim constant
LANES = 128                                                         # lane width for padded hidden/action
DEFAULT_BLOCK_B = 16                                                # batch tile (bf16 sublane tile)


def _round_up(x, m):
    return ((x + m - 1) // m) * m


def _policy_kernel(*refs, s_dim, a_dim, w1_rows, stochastic):
    """One batch tile of the PolicyNet forward.

    refs (stochastic):    x_ref (BT,s_dim) f32, n_ref (BT,a_dim) f32,
                          w_ref (w1_rows+256,128) bf16, b_ref (8,128) f32,
                          act_ref (BT,a_dim) f32, logp_ref (BT,1) f32
    refs (deterministic): same, without n_ref.
    """
    if stochastic:
        x_ref, n_ref, w_ref, b_ref, act_ref, logp_ref = refs
    else:
        x_ref, w_ref, b_ref, act_ref, logp_ref = refs

    x = x_ref[...].astype(jnp.bfloat16)                      # (BT, s_dim) unpadded

    w1 = w_ref[0:s_dim, :]                                   # (s_dim, 128)  lanes >= hidden are 0
    w2 = w_ref[w1_rows:w1_rows + LANES, :]                   # (128, 128)    rows  >= hidden are 0
    w3 = w_ref[w1_rows + LANES:w1_rows + 2 * LANES, :]       # (128, 128)    rows  >= hidden are 0
    b = b_ref[...]                                           # (8, 128) f32
    b1, b2, b3 = b[0:1, :], b[1:2, :], b[2:3, :]

    # self.main: Linear -> ReLU -> Linear -> ReLU  (bf16 MXU operands, f32 accumulate/elementwise)
    h1 = jnp.maximum(jnp.dot(x, w1, preferred_element_type=jnp.float32) + b1, 0.0)
    h2 = jnp.maximum(
        jnp.dot(h1.astype(jnp.bfloat16), w2, preferred_element_type=jnp.float32) + b2, 0.0)

    # self.dist mean head; only lanes [0, a_dim) are meaningful
    mean = jnp.dot(h2.astype(jnp.bfloat16), w3, preferred_element_type=jnp.float32) + b3
    mean_a = mean[:, 0:a_dim]                                # (BT, a_dim)

    if stochastic:
        eps = n_ref[...]                                     # (BT, a_dim) f32
        act_ref[...] = mean_a + STD * eps                    # dist.sample()
        # (action - mean) == STD * eps exactly -> per-dim logp = -0.5*eps^2 + LOGP_CONST
        logp_ref[...] = (jnp.sum(-0.5 * (eps * eps), axis=-1, keepdims=True)
                         + a_dim * LOGP_CONST)
    else:
        act_ref[...] = mean_a                                # dist.mode()
        logp_ref[...] = jnp.full(logp_ref.shape, a_dim * LOGP_CONST, dtype=jnp.float32)


@functools.partial(jax.jit, static_argnames=("a_dim", "deterministic", "block_b"))
def policy_forward(state, w_slab, b_slab, noise, a_dim, deterministic=False,
                   block_b=DEFAULT_BLOCK_B):
    """PolicyNet.forward: returns (action (B, a_dim), log_probs (B, 1))."""
    B, s_dim = state.shape
    w1_rows = _round_up(s_dim, 16)
    assert 1 <= a_dim <= LANES, "a_dim must fit in one lane tile"
    assert w_slab.shape == (w1_rows + 2 * LANES, LANES) and w_slab.dtype == jnp.bfloat16
    assert b_slab.shape == (8, LANES) and b_slab.dtype == jnp.float32

    state = state.astype(jnp.float32)
    bt = min(block_b, B)
    nb = pl.cdiv(B, bt)
    bp = nb * bt
    if bp != B:                                              # static pad to whole tiles (no-op if aligned)
        state = jnp.concatenate([state, jnp.zeros((bp - B, s_dim), jnp.float32)], axis=0)

    args = [state]
    in_specs = [pl.BlockSpec((bt, s_dim), lambda i: (i, 0))]
    if not deterministic:
        noise = noise.astype(jnp.float32)
        if bp != B:
            noise = jnp.concatenate([noise, jnp.zeros((bp - B, a_dim), jnp.float32)], axis=0)
        args.append(noise)
        in_specs.append(pl.BlockSpec((bt, a_dim), lambda i: (i, 0)))
    args += [w_slab, b_slab]
    in_specs += [pl.BlockSpec(w_slab.shape, lambda i: (0, 0)),   # constant index -> DMA once, resident
                 pl.BlockSpec(b_slab.shape, lambda i: (0, 0))]

    kernel = functools.partial(_policy_kernel, s_dim=s_dim, a_dim=a_dim,
                               w1_rows=w1_rows, stochastic=not deterministic)
    action, log_probs = pl.pallas_call(
        kernel,
        grid=(nb,),
        in_specs=in_specs,
        out_specs=[pl.BlockSpec((bt, a_dim), lambda i: (i, 0)),
                   pl.BlockSpec((bt, 1), lambda i: (i, 0))],
        out_shape=(jax.ShapeDtypeStruct((bp, a_dim), jnp.float32),
                   jax.ShapeDtypeStruct((bp, 1), jnp.float32)),
        compiler_params=pltpu.CompilerParams(dimension_semantics=("parallel",)),
    )(*args)
    if bp != B:
        action, log_probs = action[:B], log_probs[:B]
    return action, log_probs


def pack_params(params, s_dim, hidden, a_dim):
    """Pack weights into a bf16 (round_up(s_dim,16)+256, 128) slab and biases into an f32
    (8, 128) slab.  Weight-slab rows:
      [0, s_dim)                                  W1 (s_dim x hidden), lane-padded with zeros
      [w1_rows, w1_rows+hidden)                   W2 (hidden x hidden)
      [w1_rows+128, w1_rows+128+hidden)           W3 (hidden x a_dim)
    Zero padding everywhere else keeps the row/lane-padded matmuls exact."""
    assert hidden <= LANES and a_dim <= LANES, "hidden/a_dim must fit in one lane tile"
    w1_rows = _round_up(s_dim, 16)
    w = jnp.zeros((w1_rows + 2 * LANES, LANES), jnp.float32)
    w = w.at[0:s_dim, 0:hidden].set(params["w1"])
    w = w.at[w1_rows:w1_rows + hidden, 0:hidden].set(params["w2"])
    w = w.at[w1_rows + LANES:w1_rows + LANES + hidden, 0:a_dim].set(params["w3"])
    b = jnp.zeros((8, LANES), jnp.float32)                    # biases kept f32 (exact if trained)
    b = b.at[0, 0:hidden].set(params["b1"].reshape(-1))
    b = b.at[1, 0:hidden].set(params["b2"].reshape(-1))
    b = b.at[2, 0:a_dim].set(params["b3"].reshape(-1))
    return w.astype(jnp.bfloat16), b


def _orthogonal(key, shape, gain):
    """Deterministic orthogonal init (matches nn.init.orthogonal_ semantics)."""
    rows, cols = shape
    n = max(rows, cols)
    a = jax.random.normal(key, (n, n), dtype=jnp.float32)
    q, r = jnp.linalg.qr(a)
    q = q * jnp.sign(jnp.diag(r))
    return gain * q[:rows, :cols]


def init_params(key, s_dim, hidden, a_dim):
    gain_relu = jnp.sqrt(2.0)                                 # nn.init.calculate_gain('relu')
    k1, k2, k3 = jax.random.split(key, 3)
    return {
        "w1": _orthogonal(k1, (s_dim, hidden), gain_relu),
        "b1": jnp.zeros((1, hidden), jnp.float32),
        "w2": _orthogonal(k2, (hidden, hidden), gain_relu),
        "b2": jnp.zeros((1, hidden), jnp.float32),
        "w3": _orthogonal(k3, (hidden, a_dim), 1.0),          # dist head: gain 1, bias 0
        "b3": jnp.zeros((1, a_dim), jnp.float32),
    }


def policy_reference(state, params, noise, deterministic=False):
    """Pure-JAX f32 reference for correctness checking."""
    h1 = jnp.maximum(state @ params["w1"] + params["b1"], 0.0)
    h2 = jnp.maximum(h1 @ params["w2"] + params["b2"], 0.0)
    mean = h2 @ params["w3"] + params["b3"]
    eps = jnp.zeros_like(noise) if deterministic else noise
    action = mean + STD * eps
    logp = jnp.sum(-0.5 * eps * eps + LOGP_CONST, axis=-1, keepdims=True)
    return action, logp


if __name__ == "__main__":
    # Many env steps per call: the batch grid amortizes weight DMA and launch overhead.
    B, S_DIM, HIDDEN, A_DIM = 64, 16, 32, 4

    key = jax.random.PRNGKey(0)
    k_param, k_state, k_noise = jax.random.split(key, 3)

    params = init_params(k_param, S_DIM, HIDDEN, A_DIM)
    w_slab, b_slab = pack_params(params, S_DIM, HIDDEN, A_DIM)   # packed once, reused every call
    state = jax.random.normal(k_state, (B, S_DIM), dtype=jnp.float32)
    noise = jax.random.normal(k_noise, (B, A_DIM), dtype=jnp.float32)

    # stochastic path (dist.sample())
    action, log_probs = policy_forward(state, w_slab, b_slab, noise, A_DIM, deterministic=False)
    jax.block_until_ready((action, log_probs))

    # deterministic path (dist.mode())
    action_det, log_probs_det = policy_forward(state, w_slab, b_slab, noise, A_DIM,
                                               deterministic=True)
    jax.block_until_ready((action_det, log_probs_det))

    assert action.shape == (B, A_DIM) and log_probs.shape == (B, 1)
    assert action_det.shape == (B, A_DIM) and log_probs_det.shape == (B, 1)
    # log-prob of the mode is the maximum of the diagonal Gaussian
    assert bool(jnp.all(log_probs_det >= log_probs - 1e-5))

    # cross-check against the pure-JAX f32 reference (loose tol on action: bf16 MXU operands)
    ref_act, ref_lp = policy_reference(state, params, noise, deterministic=False)
    ref_act_d, ref_lp_d = policy_reference(state, params, noise, deterministic=True)
    assert bool(jnp.allclose(action, ref_act, atol=0.2, rtol=0.1))
    assert bool(jnp.allclose(action_det, ref_act_d, atol=0.2, rtol=0.1))
    assert bool(jnp.allclose(log_probs, ref_lp, atol=1e-4))
    assert bool(jnp.allclose(log_probs_det, ref_lp_d, atol=1e-4))

    print("KERNEL_OK")
</pallas_src>

<mosaic_0001>
module attributes {stable_mosaic.version = 11 : i64} {
  func.func @_policy_kernel(%arg0: i32, %arg1: memref<16x16xf32, #tpu.memory_space<vmem>>, %arg2: memref<16x4xf32, #tpu.memory_space<vmem>>, %arg3: memref<272x128xbf16, #tpu.memory_space<vmem>>, %arg4: memref<8x128xf32, #tpu.memory_space<vmem>>, %arg5: memref<16x4xf32, #tpu.memory_space<vmem>>, %arg6: memref<16x1xf32, #tpu.memory_space<vmem>>) attributes {dimension_semantics = [#tpu.dimension_semantics<parallel>], iteration_bounds = array<i64: 4>, scalar_prefetch = 0 : i64, scratch_operands = 0 : i64, tpu.core_type = #tpu.core_type<tc>, window_params = [{transform_indices = @transform_0, window_bounds = array<i64: 16, 16>}, {transform_indices = @transform_1, window_bounds = array<i64: 16, 4>}, {pipeline_mode = #tpu.pipeline_mode<synchronous>, transform_indices = @transform_2, window_bounds = array<i64: 272, 128>}, {pipeline_mode = #tpu.pipeline_mode<synchronous>, transform_indices = @transform_3, window_bounds = array<i64: 8, 128>}, {transform_indices = @transform_4, window_bounds = array<i64: 16, 4>}, {transform_indices = @transform_5, window_bounds = array<i64: 16, 1>}]} {
    %c0 = arith.constant 0 : index
    %c0_0 = arith.constant 0 : index
    %0 = vector.load %arg1[%c0, %c0_0] : memref<16x16xf32, #tpu.memory_space<vmem>>, vector<16x16xf32>
    %1 = arith.truncf %0 : vector<16x16xf32> to vector<16x16xbf16>
    %c0_1 = arith.constant 0 : index
    %c0_2 = arith.constant 0 : index
    %2 = vector.load %arg3[%c0_1, %c0_2] : memref<272x128xbf16, #tpu.memory_space<vmem>>, vector<16x128xbf16>
    %c16 = arith.constant 16 : index
    %c0_3 = arith.constant 0 : index
    %3 = vector.load %arg3[%c16, %c0_3] : memref<272x128xbf16, #tpu.memory_space<vmem>>, vector<128x128xbf16>
    %c144 = arith.constant 144 : index
    %c0_4 = arith.constant 0 : index
    %4 = vector.load %arg3[%c144, %c0_4] : memref<272x128xbf16, #tpu.memory_space<vmem>>, vector<128x128xbf16>
    %c0_5 = arith.constant 0 : index
    %c0_6 = arith.constant 0 : index
    %5 = vector.load %arg4[%c0_5, %c0_6] : memref<8x128xf32, #tpu.memory_space<vmem>>, vector<8x128xf32>
    %6 = vector.extract_strided_slice %5 {offsets = [0, 0], sizes = [1, 128], strides = [1, 1]} : vector<8x128xf32> to vector<1x128xf32>
    %7 = vector.extract_strided_slice %5 {offsets = [1, 0], sizes = [1, 128], strides = [1, 1]} : vector<8x128xf32> to vector<1x128xf32>
    %8 = vector.extract_strided_slice %5 {offsets = [2, 0], sizes = [1, 128], strides = [1, 1]} : vector<8x128xf32> to vector<1x128xf32>
    %cst = arith.constant dense<0.000000e+00> : vector<16x128xf32>
    %9 = tpu.matmul %1, %2, %cst {dimension_numbers = #tpu.dot_dimension_numbers<[1], [0], [0], [1], [0, 0, 1, 1], [], []>} : vector<16x16xbf16>, vector<16x128xbf16>, vector<16x128xf32> -> vector<16x128xf32>
    %10 = vector.broadcast %6 : vector<1x128xf32> to vector<16x128xf32>
    %11 = arith.addf %9, %10 : vector<16x128xf32>
    %cst_7 = arith.constant 0.000000e+00 : f32
    %12 = vector.broadcast %cst_7 : f32 to vector<16x128xf32>
    %13 = arith.maximumf %11, %12 : vector<16x128xf32>
    %14 = arith.truncf %13 : vector<16x128xf32> to vector<16x128xbf16>
    %cst_8 = arith.constant dense<0.000000e+00> : vector<16x128xf32>
    %15 = tpu.matmul %14, %3, %cst_8 {dimension_numbers = #tpu.dot_dimension_numbers<[1], [0], [0], [1], [0, 0, 1, 1], [], []>} : vector<16x128xbf16>, vector<128x128xbf16>, vector<16x128xf32> -> vector<16x128xf32>
    %16 = vector.broadcast %7 : vector<1x128xf32> to vector<16x128xf32>
    %17 = arith.addf %15, %16 : vector<16x128xf32>
    %cst_9 = arith.constant 0.000000e+00 : f32
    %18 = vector.broadcast %cst_9 : f32 to vector<16x128xf32>
    %19 = arith.maximumf %17, %18 : vector<16x128xf32>
    %20 = arith.truncf %19 : vector<16x128xf32> to vector<16x128xbf16>
    %cst_10 = arith.constant dense<0.000000e+00> : vector<16x128xf32>
    %21 = tpu.matmul %20, %4, %cst_10 {dimension_numbers = #tpu.dot_dimension_numbers<[1], [0], [0], [1], [0, 0, 1, 1], [], []>} : vector<16x128xbf16>, vector<128x128xbf16>, vector<16x128xf32> -> vector<16x128xf32>
    %22 = vector.broadcast %8 : vector<1x128xf32> to vector<16x128xf32>
    %23 = arith.addf %21, %22 : vector<16x128xf32>
    %24 = vector.extract_strided_slice %23 {offsets = [0, 0], sizes = [16, 4], strides = [1, 1]} : vector<16x128xf32> to vector<16x4xf32>
    %c0_11 = arith.constant 0 : index
    %c0_12 = arith.constant 0 : index
    %25 = vector.load %arg2[%c0_11, %c0_12] : memref<16x4xf32, #tpu.memory_space<vmem>>, vector<16x4xf32>
    %cst_13 = arith.constant 5.000000e-01 : f32
    %26 = vector.broadcast %cst_13 : f32 to vector<16x4xf32>
    %27 = arith.mulf %26, %25 : vector<16x4xf32>
    %28 = arith.addf %24, %27 : vector<16x4xf32>
    %c0_14 = arith.constant 0 : index
    %c0_15 = arith.constant 0 : index
    %29 = vector.load %arg5[%c0_14, %c0_15] : memref<16x4xf32, #tpu.memory_space<vmem>>, vector<16x4xf32>
    tpu.vector_store %arg5[%c0_14, %c0_15], %28 {strides = array<i32>} : memref<16x4xf32, #tpu.memory_space<vmem>>, vector<16x4xf32>,
    %30 = arith.mulf %25, %25 : vector<16x4xf32>
    %cst_16 = arith.constant -5.000000e-01 : f32
    %31 = vector.broadcast %cst_16 : f32 to vector<16x4xf32>
    %32 = arith.mulf %31, %30 : vector<16x4xf32>
    %cst_17 = arith.constant dense<0.000000e+00> : vector<16xf32>
    %33 = vector.multi_reduction <add>, %32, %cst_17 [1] : vector<16x4xf32> to vector<16xf32>
    %34 = vector.shape_cast %33 : vector<16xf32> to vector<16x1xf32>
    %cst_18 = arith.constant -0.9031654 : f32
    %35 = vector.broadcast %cst_18 : f32 to vector<16x1xf32>
    %36 = arith.addf %34, %35 : vector<16x1xf32>
    %c0_19 = arith.constant 0 : index
    %c0_20 = arith.constant 0 : index
    %37 = vector.load %arg6[%c0_19, %c0_20] : memref<16x1xf32, #tpu.memory_space<vmem>>, vector<16x1xf32>
    tpu.vector_store %arg6[%c0_19, %c0_20], %36 {strides = array<i32>} : memref<16x1xf32, #tpu.memory_space<vmem>>, vector<16x1xf32>,
    return
  }
  func.func @transform_0(%arg0: i32) -> (i32, i32) {
    %c0_i32 = arith.constant 0 : i32
    %c0_i32_0 = arith.constant 0 : i32
    return %arg0, %c0_i32 : i32, i32
  }
  func.func @transform_1(%arg0: i32) -> (i32, i32) {
    %c0_i32 = arith.constant 0 : i32
    %c0_i32_0 = arith.constant 0 : i32
    return %arg0, %c0_i32 : i32, i32
  }
  func.func @transform_2(%arg0: i32) -> (i32, i32) {
    %c0_i32 = arith.constant 0 : i32
    %c0_i32_0 = arith.constant 0 : i32
    %c0_i32_1 = arith.constant 0 : i32
    return %c0_i32, %c0_i32_0 : i32, i32
  }
  func.func @transform_3(%arg0: i32) -> (i32, i32) {
    %c0_i32 = arith.constant 0 : i32
    %c0_i32_0 = arith.constant 0 : i32
    %c0_i32_1 = arith.constant 0 : i32
    return %c0_i32, %c0_i32_0 : i32, i32
  }
  func.func @transform_4(%arg0: i32) -> (i32, i32) {
    %c0_i32 = arith.constant 0 : i32
    %c0_i32_0 = arith.constant 0 : i32
    return %arg0, %c0_i32 : i32, i32
  }
  func.func @transform_5(%arg0: i32) -> (i32, i32) {
    %c0_i32 = arith.constant 0 : i32
    %c0_i32_0 = arith.constant 0 : i32
    return %arg0, %c0_i32 : i32, i32
  }
}

</mosaic_0001>

<llo_original>
// kernel: policy_forward.1
$region0: #{policy_forward.1}
  #allocation0 [shape = 'u32[]', space=smem, size = 0x4, offset = 0x4, fixed_abs, tag = 'smem constant byte address 0x4 - core index']
  #allocation1 [shape = 'u32[144,128]{1,0:T(1,128)}', space=vmem, size = 0x12000, scoped, tag = 'internal scratch']
  %s0 = inlined_call_operand.vmem [shape: f32[64,16], index: 0, kind: input, shape index: {}]
  %s1 = inlined_call_operand.vmem [shape: f32[64,4], index: 1, kind: input, shape index: {}]
  %s2 = inlined_call_operand.vmem [shape: bf16[272,128], index: 2, kind: input, shape index: {}]
  %s3 = inlined_call_operand.vmem [shape: f32[8,128], index: 3, kind: input, shape index: {}]
  %s4 = inlined_call_operand.vmem [shape: f32[64,4], index: 4, kind: output, shape index: {0}]
  %s5 = inlined_call_operand.vmem [shape: f32[64,1], index: 5, kind: output, shape index: {1}]
  %6 = xla_tuple %s4, %s5
  %s7 = sld [smem:[#allocation0]]
  $region57: #{policy_forward.1} parent=0
    _
  %s9 = ssub.s32 1, %s7
  %s10 = scalar_select 0, %s9, %s7
  loop: start=0, step=1, limit=6
  $region2: #{policy_forward.1} parent=0 // loop_pre_header
    _
  $region3: #{policy_forward.1} parent=0 // loop_header
    %s12 = sphi 0, %s16
    %p13 = scmp.ge.s32.totalorder %s12, 6
    %s22 = sphi 0, %s24
    %s25 = sphi 0, %s22
    %s26 = sphi 0, %s25
    %s42 = sphi 0, %s26
    %s48 = sphi 0, %s50
    %s51 = sphi 0, %s48
    %s52 = sphi 0, %s51
    %s68 = sphi 0, %s52
    %s72 = sphi 0, %s72
    %s74 = sphi 0, %s72
    %s75 = sphi 0, %s74
    %s89 = sphi 0, %s75
    %s93 = sphi 0, %s93
    %s95 = sphi 0, %s93
    %s96 = sphi 0, %s95
    %s110 = sphi 0, %s96
    %s116 = sphi 0, %s118
    %s119 = sphi 0, %s116
    %s120 = sphi 0, %s119
    %s136 = sphi 0, %s120
    %s142 = sphi 0, %s144
    %s145 = sphi 0, %s142
    %s146 = sphi 0, %s145
    %s162 = sphi 0, %s146
  $region4: #{policy_forward.1} parent=0 // loop_header_branch
    %15 = sbr.rel (%p13) target = $region8
  $region5: #{policy_forward.1} parent=0 // loop_body
    %s17 = ssub.s32 %s12, 1
    %s18 = ssub.s32 %s12, 2
    %s19 = sadd.s32 %s12, 1
    %s20 = ssub.s32 %s12, %s19
    %p21 = scmp.eq.s32.totalorder %s20, 0
    %s23 = sadd.s32 %s22, 1
    %s24 = scalar_select %p21, %s22, %s23
    %p27 = pneg %p21
    %p28 = scmp.eq.s32.totalorder %s12, 3
    %p29 = por %p27, %p28
    %p30 = scmp.ne.s32.totalorder %s22, %s25
    %p31 = scmp.eq.s32.totalorder %s12, 0
    %p32 = por %p30, %p31
    %p33 = scmp.ne.s32.totalorder %s22, %s25
    %p34 = scmp.eq.s32.totalorder %s17, 3
    %p35 = por %p33, %p34
    %p36 = scmp.ne.s32.totalorder %s25, %s26
    %p37 = scmp.eq.s32.totalorder %s17, 0
    %p38 = por %p36, %p37
    %p39 = scmp.ne.s32.totalorder %s25, %s26
    %p40 = scmp.eq.s32.totalorder %s18, 3
    %p41 = por %p39, %p40
    %p43 = scmp.ne.s32.totalorder %s26, %s42
    %p44 = scmp.eq.s32.totalorder %s18, 0
    %p45 = por %p43, %p44
    %s46 = ssub.s32 %s12, %s19
    %p47 = scmp.eq.s32.totalorder %s46, 0
    %s49 = sadd.s32 %s48, 1
    %s50 = scalar_select %p47, %s48, %s49
    %p53 = pneg %p47
    %p54 = scmp.eq.s32.totalorder %s12, 3
    %p55 = por %p53, %p54
    %p56 = scmp.ne.s32.totalorder %s48, %s51
    %p57 = scmp.eq.s32.totalorder %s12, 0
    %p58 = por %p56, %p57
    %p59 = scmp.ne.s32.totalorder %s48, %s51
    %p60 = scmp.eq.s32.totalorder %s17, 3
    %p61 = por %p59, %p60
    %p62 = scmp.ne.s32.totalorder %s51, %s52
    %p63 = scmp.eq.s32.totalorder %s17, 0
    %p64 = por %p62, %p63
    %p65 = scmp.ne.s32.totalorder %s51, %s52
    %p66 = scmp.eq.s32.totalorder %s18, 3
    %p67 = por %p65, %p66
    %p69 = scmp.ne.s32.totalorder %s52, %s68
    %p70 = scmp.eq.s32.totalorder %s18, 0
    %p71 = por %p69, %p70
    %s73 = sadd.s32 %s72, 1
    %p76 = scmp.eq.s32.totalorder %s12, 3
    %p77 = scmp.ne.s32.totalorder %s72, %s74
    %p78 = scmp.eq.s32.totalorder %s12, 0
    %p79 = por %p77, %p78
    %p80 = scmp.ne.s32.totalorder %s72, %s74
    %p81 = scmp.eq.s32.totalorder %s17, 3
    %p82 = por %p80, %p81
    %p83 = scmp.ne.s32.totalorder %s74, %s75
    %p84 = scmp.eq.s32.totalorder %s17, 0
    %p85 = por %p83, %p84
    %p86 = scmp.ne.s32.totalorder %s74, %s75
    %p87 = scmp.eq.s32.totalorder %s18, 3
    %p88 = por %p86, %p87
    %p90 = scmp.ne.s32.totalorder %s75, %s89
    %p91 = scmp.eq.s32.totalorder %s18, 0
    %p92 = por %p90, %p91
    %s94 = sadd.s32 %s93, 1
    %p97 = scmp.eq.s32.totalorder %s12, 3
    %p98 = scmp.ne.s32.totalorder %s93, %s95
    %p99 = scmp.eq.s32.totalorder %s12, 0
    %p100 = por %p98, %p99
    %p101 = scmp.ne.s32.totalorder %s93, %s95
    %p102 = scmp.eq.s32.totalorder %s17, 3
    %p103 = por %p101, %p102
    %p104 = scmp.ne.s32.totalorder %s95, %s96
    %p105 = scmp.eq.s32.totalorder %s17, 0
    %p106 = por %p104, %p105
    %p107 = scmp.ne.s32.totalorder %s95, %s96
    %p108 = scmp.eq.s32.totalorder %s18, 3
    %p109 = por %p107, %p108
    %p111 = scmp.ne.s32.totalorder %s96, %s110
    %p112 = scmp.eq.s32.totalorder %s18, 0
    %p113 = por %p111, %p112
    %s114 = ssub.s32 %s12, %s19
    %p115 = scmp.eq.s32.totalorder %s114, 0
    %s117 = sadd.s32 %s116, 1
    %s118 = scalar_select %p115, %s116, %s117
    %p121 = pneg %p115
    %p122 = scmp.eq.s32.totalorder %s12, 3
    %p123 = por %p121, %p122
    %p124 = scmp.ne.s32.totalorder %s116, %s119
    %p125 = scmp.eq.s32.totalorder %s12, 0
    %p126 = por %p124, %p125
    %p127 = scmp.ne.s32.totalorder %s116, %s119
    %p128 = scmp.eq.s32.totalorder %s17, 3
    %p129 = por %p127, %p128
    %p130 = scmp.ne.s32.totalorder %s119, %s120
    %p131 = scmp.eq.s32.totalorder %s17, 0
    %p132 = por %p130, %p131
    %p133 = scmp.ne.s32.totalorder %s119, %s120
    %p134 = scmp.eq.s32.totalorder %s18, 3
    %p135 = por %p133, %p134
    %p137 = scmp.ne.s32.totalorder %s120, %s136
    %p138 = scmp.eq.s32.totalorder %s18, 0
    %p139 = por %p137, %p138
    %s140 = ssub.s32 %s12, %s19
    %p141 = scmp.eq.s32.totalorder %s140, 0
    %s143 = sadd.s32 %s142, 1
    %s144 = scalar_select %p141, %s142, %s143
    %p147 = pneg %p141
    %p148 = scmp.eq.s32.totalorder %s12, 3
    %p149 = por %p147, %p148
    %p150 = scmp.ne.s32.totalorder %s142, %s145
    %p151 = scmp.eq.s32.totalorder %s12, 0
    %p152 = por %p150, %p151
    %p153 = scmp.ne.s32.totalorder %s142, %s145
    %p154 = scmp.eq.s32.totalorder %s17, 3
    %p155 = por %p153, %p154
    %p156 = scmp.ne.s32.totalorder %s145, %s146
    %p157 = scmp.eq.s32.totalorder %s17, 0
    %p158 = por %p156, %p157
    %p159 = scmp.ne.s32.totalorder %s145, %s146
    %p160 = scmp.eq.s32.totalorder %s18, 3
    %p161 = por %p159, %p160
    %p163 = scmp.ne.s32.totalorder %s146, %s162
    %p164 = scmp.eq.s32.totalorder %s18, 0
    %p165 = por %p163, %p164
    %p166 = scmp.le.s32.totalorder 1, %s12
    %p167 = scmp.lt.s32.totalorder %s12, 5
    %p168 = pnand %p166, %p167
    %p169 = pneg %p168
    // Predicated region
    $region9: #{policy_forward.1} parent=5 // pred_check
      _
    $region10: #{policy_forward.1} parent=5 // pred_check_branch
      %171 = sbr.rel (%p168) target = $region12
    $region11: #{policy_forward.1} parent=5 // pred_region
      %s172 = ssub.s32 %s12, 1
      // Predicated region
      $region13: #{policy_forward.1} parent=11 // pred_check
        %p173 = pneg %p85
      $region14: #{policy_forward.1} parent=11 // pred_check_branch
        %175 = sbr.rel (%p173) target = $region16
      $region15: #{policy_forward.1} parent=11 // pred_region
        _
      $region16: #{policy_forward.1} parent=11 // pred_fallthru
        _
      // Predicated region
      $region17: #{policy_forward.1} parent=11 // pred_check
        %p176 = pneg %p106
      $region18: #{policy_forward.1} parent=11 // pred_check_branch
        %178 = sbr.rel (%p176) target = $region20
      $region19: #{policy_forward.1} parent=11 // pred_region
        _
      $region20: #{policy_forward.1} parent=11 // pred_fallthru
        _
    $region12: #{policy_forward.1} parent=5 // pred_fallthru
      _
    %p179 = scmp.lt.s32.totalorder %s12, 4
    // Predicated region
    $region21: #{policy_forward.1} parent=5 // pred_check
      %p180 = pneg %p179
    $region22: #{policy_forward.1} parent=5 // pred_check_branch
      %182 = sbr.rel (%p180) target = $region24
    $region23: #{policy_forward.1} parent=5 // pred_region
      // Predicated region
      $region25: #{policy_forward.1} parent=23 // pred_check
        %p183 = pneg %p32
      $region26: #{policy_forward.1} parent=23 // pred_check_branch
        %185 = sbr.rel (%p183) target = $region28
      $region27: #{policy_forward.1} parent=23 // pred_region
        %s186 = smul.u32 2, %s12
        %p187 = scmp.lt.s32.totalorder %s186, 7
        %s188 = scalar_select %p187, %s186, 7
        %s189 = smul.addr %s188, 8
        %s190 = scalar_lea.vmem %s0, %s189
        %s191 = smul.u32 2, %s12
      $region28: #{policy_forward.1} parent=23 // pred_fallthru
        _
      // Predicated region
      $region29: #{policy_forward.1} parent=23 // pred_check
        %p192 = pneg %p58
      $region30: #{policy_forward.1} parent=23 // pred_check_branch
        %194 = sbr.rel (%p192) target = $region32
      $region31: #{policy_forward.1} parent=23 // pred_region
        %s195 = smul.u32 2, %s12
        %p196 = scmp.lt.s32.totalorder %s195, 7
        %s197 = scalar_select %p196, %s195, 7
        %s198 = smul.addr %s197, 8
        %s199 = scalar_lea.vmem %s1, %s198
        %s200 = smul.u32 2, %s12
      $region32: #{policy_forward.1} parent=23 // pred_fallthru
        _
    $region24: #{policy_forward.1} parent=5 // pred_fallthru
      _
    %p201 = scmp.le.s32.totalorder 1, %s12
    %p202 = scmp.lt.s32.totalorder %s12, 5
    %p203 = pnand %p201, %p202
    %p204 = pneg %p203
    // Predicated region
    $region33: #{policy_forward.1} parent=5 // pred_check
      _
    $region34: #{policy_forward.1} parent=5 // pred_check_branch
      %206 = sbr.rel (%p203) target = $region36
    $region35: #{policy_forward.1} parent=5 // pred_region
      %s207 = ssub.s32 %s12, 1
      %s208 = smul.u32 2, %s17
      %p209 = scmp.lt.s32.totalorder %s208, 7
      %s210 = scalar_select %p209, %s208, 7
      %s211 = smul.addr %s210, 8
      %s212 = scalar_lea.vmem %s0, %s211
      %p213 = pneg %p38
      %p214 = pneg %p35
      %s215 = smul.u32 2, %s17
      %p216 = scmp.lt.s32.totalorder %s215, 7
      %s217 = scalar_select %p216, %s215, 7
      %s218 = smul.addr %s217, 8
      %s219 = scalar_lea.vmem %s1, %s218
      %p220 = pneg %p64
      %p221 = pneg %p61
      %p222 = pneg %p85
      %p223 = pneg %p82
      %p224 = pneg %p106
      %p225 = pneg %p103
      %p226 = pneg %p132
      %p227 = pneg %p129
      %s228 = smul.u32 2, %s17
      %p229 = scmp.lt.s32.totalorder %s228, 7
      %s230 = scalar_select %p229, %s228, 7
      %s231 = smul.addr %s230, 8
      %s232 = scalar_lea.vmem %s4, %s231
      %p233 = pneg %p158
      %p234 = pneg %p155
      %s235 = smul.u32 2, %s17
      %p236 = scmp.lt.s32.totalorder %s235, 7
      %s237 = scalar_select %p236, %s235, 7
      %s238 = smul.addr %s237, 8
      %s239 = scalar_lea.vmem %s5, %s238
      %s240 = smul.u32 2, %s17
      %p241 = scmp.lt.s32.totalorder %s240, 7
      %s242 = scalar_select %p241, %s240, 7
      %s243 = smul.addr %s242, 8
      %s244 = scalar_lea.vmem %s0, %s243
      %s245 = smul.u32 2, %s17
      %s246 = smul.u32 2, %s17
      %p247 = scmp.lt.s32.totalorder %s246, 7
      %s248 = scalar_select %p247, %s246, 7
      %s249 = smul.addr %s248, 8
      %s250 = scalar_lea.vmem %s1, %s249
      %s251 = smul.u32 2, %s17
      %s252 = smul.u32 2, %s17
      %p253 = scmp.lt.s32.totalorder %s252, 7
      %s254 = scalar_select %p253, %s252, 7
      %s255 = smul.addr %s254, 8
      %s256 = scalar_lea.vmem %s4, %s255
      %s257 = smul.u32 2, %s17
      %s258 = smul.u32 2, %s17
      %p259 = scmp.lt.s32.totalorder %s258, 7
      %s260 = scalar_select %p259, %s258, 7
      %s261 = smul.addr %s260, 8
      %s262 = scalar_lea.vmem %s5, %s261
      %s263 = smul.u32 2, %s17
      %v265 = vld [vmem:[%s244] sm:$0xff]
      %v266 = vld [vmem:[%s244 + $0x8] sm:$0xff]
      %v267 = vpack.c.bf16 %v266, %v265
      %v268 = vld [vmem:[%s2] sm:$0xf]
      %v269 = vld [vmem:[%s2 + $0x4] sm:$0xf]
      %v270 = vld [vmem:[%s2 + $0x8] sm:$0xf]
      %v271 = vld [vmem:[%s2 + $0xc] sm:$0xf]
      %v272 = vld [vmem:[%s2 + $0x10] sm:$0xf]
      %v273 = vld [vmem:[%s2 + $0x14] sm:$0xf]
      %v274 = vld [vmem:[%s2 + $0x18] sm:$0xf]
      %v275 = vld [vmem:[%s2 + $0x1c] sm:$0xf]
      %v276 = vld [vmem:[%s2 + $0x20] sm:$0xf]
      %v277 = vld [vmem:[%s2 + $0x24] sm:$0xf]
      %v278 = vld [vmem:[%s2 + $0x28] sm:$0xf]
      %v279 = vld [vmem:[%s2 + $0x2c] sm:$0xf]
      %v280 = vld [vmem:[%s2 + $0x30] sm:$0xf]
      %v281 = vld [vmem:[%s2 + $0x34] sm:$0xf]
      %v282 = vld [vmem:[%s2 + $0x38] sm:$0xf]
      %v283 = vld [vmem:[%s2 + $0x3c] sm:$0xf]
      %v284 = vld [vmem:[%s2 + $0x40] sm:$0xf]
      %v285 = vld [vmem:[%s2 + $0x44] sm:$0xf]
      %v286 = vld [vmem:[%s2 + $0x48] sm:$0xf]
      %v287 = vld [vmem:[%s2 + $0x4c] sm:$0xf]
      %v288 = vld [vmem:[%s2 + $0x50] sm:$0xf]
      %v289 = vld [vmem:[%s2 + $0x54] sm:$0xf]
      %v290 = vld [vmem:[%s2 + $0x58] sm:$0xf]
      %v291 = vld [vmem:[%s2 + $0x5c] sm:$0xf]
      %v292 = vld [vmem:[%s2 + $0x60] sm:$0xf]
      %v293 = vld [vmem:[%s2 + $0x64] sm:$0xf]
      %v294 = vld [vmem:[%s2 + $0x68] sm:$0xf]
      %v295 = vld [vmem:[%s2 + $0x6c] sm:$0xf]
      %v296 = vld [vmem:[%s2 + $0x70] sm:$0xf]
      %v297 = vld [vmem:[%s2 + $0x74] sm:$0xf]
      %v298 = vld [vmem:[%s2 + $0x78] sm:$0xf]
      %v299 = vld [vmem:[%s2 + $0x7c] sm:$0xf]
      %v300 = vld [vmem:[%s2 + $0x80] sm:$0xf]
      %v301 = vld [vmem:[%s2 + $0x84] sm:$0xf]
      %v302 = vld [vmem:[%s3] sm:$0xff]
      %v303 = vlaneseq
      %v304 = vshrl.u32 %v303, 7
      %v305 = vsub.s32 0, %v304
      %v306 = vrot.slane %v302, %v305
      %v309 = vunpack.c.l.b16 %v268
      %v310 = vunpack.c.l.b16 %v269
      %v311 = vpack.c.b16 %v310, %v309
      %vm313 = vcmask 130048
      %v315 = vsel %vm313, %v267, 0
      %317 = vmatprep.subr.bf16.mxu0 0
      %318 = vmatpush1.bf16.msra.mxu0 0
      %319 = vmatprep.subr.bf16.mxu0 0
      %320 = vmatpush1.bf16.msra.mxu0 0
      %321 = vmatprep.subr.bf16.mxu0 0
      %322 = vmatpush1.bf16.msra.mxu0 0
      %323 = vmatprep.subr.bf16.mxu0 0
      %324 = vmatpush1.bf16.msra.mxu0 0
      %325 = vmatprep.subr.bf16.mxu0 0
      %326 = vmatpush1.bf16.msra.mxu0 0
      %327 = vmatprep.subr.bf16.mxu0 0
      %328 = vmatpush1.bf16.msra.mxu0 0
      %329 = vmatprep.subr.bf16.mxu0 0
      %330 = vmatpush1.bf16.msra.mxu0 0
      %331 = vmatprep.subr.bf16.mxu0 0
      %332 = vmatpush1.bf16.msra.mxu0 %v311
      %333 = vmatprep.subr.bf16.mxu0 0
      %334 = vmatpush2.bf16.msra.mxu0 0
      %335 = vmatprep.subr.bf16.mxu0 0
      %336 = vmatpush2.bf16.msra.mxu0 0
      %337 = vmatprep.subr.bf16.mxu0 0
      %338 = vmatpush2.bf16.msra.mxu0 0
      %339 = vmatprep.subr.bf16.mxu0 0
      %340 = vmatpush2.bf16.msra.mxu0 0
      %341 = vmatprep.subr.bf16.mxu0 0
      %342 = vmatpush2.bf16.msra.mxu0 0
      %343 = vmatprep.subr.bf16.mxu0 0
      %344 = vmatpush2.bf16.msra.mxu0 0
      %345 = vmatprep.subr.bf16.mxu0 0
      %346 = vmatpush2.bf16.msra.mxu0 0
      %347 = vmatprep.subr.bf16.mxu0 0
      %348 = vmatpush2.bf16.msra.mxu0 0
      %349 = vmatprep.mubr.bf16.mxu0 0
      %350 = vmatmul.mubr.bf16.gmra.mxu0 %v315
      %v351 = vpop.f32.mrf.mxu0
      %v352 = vadd.f32 %v306, %v351
      %v353 = vpop.f32.mrf.mxu0
      %v354 = vpop.f32.mrf.mxu0
      %v355 = vadd.f32 %v306, %v354
      %v356 = vpop.f32.mrf.mxu0
      %357 = vdwg.mxu0
      %v358 = vmax.f32 %v352, 0.0
      %v359 = vmax.f32 %v355, 0.0
      %v360 = vpack.c.bf16 %v359, %v358
      %v361 = vlaneseq
      %v362 = vshrl.u32 %v361, 7
      %v363 = vsub.s32 1, %v362
      %v364 = vrot.slane %v302, %v363
      %v381 = vunpack.c.l.b16 %v270
      %v382 = vunpack.c.l.b16 %v271
      %v383 = vunpack.c.l.b16 %v272
      %v384 = vunpack.c.l.b16 %v273
      %v385 = vunpack.c.l.b16 %v274
      %v386 = vunpack.c.l.b16 %v275
      %v387 = vunpack.c.l.b16 %v276
      %v388 = vunpack.c.l.b16 %v277
      %v389 = vunpack.c.l.b16 %v278
      %v390 = vunpack.c.l.b16 %v279
      %v391 = vunpack.c.l.b16 %v280
      %v392 = vunpack.c.l.b16 %v281
      %v393 = vunpack.c.l.b16 %v282
      %v394 = vunpack.c.l.b16 %v283
      %v395 = vunpack.c.l.b16 %v284
      %v396 = vunpack.c.l.b16 %v285
      %v397 = vpack.c.b16 %v382, %v381
      %v398 = vpack.c.b16 %v384, %v383
      %v399 = vpack.c.b16 %v386, %v385
      %v400 = vpack.c.b16 %v388, %v387
      %v401 = vpack.c.b16 %v390, %v389
      %v402 = vpack.c.b16 %v392, %v391
      %v403 = vpack.c.b16 %v394, %v393
      %v404 = vpack.c.b16 %v396, %v395
      %413 = vmatprep.subr.bf16.mxu0 0
      %414 = vmatpush1.bf16.msra.mxu0 %v404
      %415 = vmatprep.subr.bf16.mxu0 0
      %416 = vmatpush1.bf16.msra.mxu0 %v403
      %417 = vmatprep.subr.bf16.mxu0 0
      %418 = vmatpush1.bf16.msra.mxu0 %v402
      %419 = vmatprep.subr.bf16.mxu0 0
      %420 = vmatpush1.bf16.msra.mxu0 %v401
      %421 = vmatprep.subr.bf16.mxu0 0
      %422 = vmatpush1.bf16.msra.mxu0 %v400
      %423 = vmatprep.subr.bf16.mxu0 0
      %424 = vmatpush1.bf16.msra.mxu0 %v399
      %425 = vmatprep.subr.bf16.mxu0 0
      %426 = vmatpush1.bf16.msra.mxu0 %v398
      %427 = vmatprep.subr.bf16.mxu0 0
      %428 = vmatpush1.bf16.msra.mxu0 %v397
      %429 = vmatprep.subr.bf16.mxu0 0
      %430 = vmatpush2.bf16.msra.mxu0 0
      %431 = vmatprep.subr.bf16.mxu0 0
      %432 = vmatpush2.bf16.msra.mxu0 0
      %433 = vmatprep.subr.bf16.mxu0 0
      %434 = vmatpush2.bf16.msra.mxu0 0
      %435 = vmatprep.subr.bf16.mxu0 0
      %436 = vmatpush2.bf16.msra.mxu0 0
      %437 = vmatprep.subr.bf16.mxu0 0
      %438 = vmatpush2.bf16.msra.mxu0 0
      %439 = vmatprep.subr.bf16.mxu0 0
      %440 = vmatpush2.bf16.msra.mxu0 0
      %441 = vmatprep.subr.bf16.mxu0 0
      %442 = vmatpush2.bf16.msra.mxu0 0
      %443 = vmatprep.subr.bf16.mxu0 0
      %444 = vmatpush2.bf16.msra.mxu0 0
      %445 = vmatprep.mubr.bf16.mxu0 0
      %446 = vmatmul.mubr.bf16.gmra.mxu0 %v360
      %v447 = vpop.f32.mrf.mxu0
      %v448 = vadd.f32 %v364, %v447
      %v449 = vpop.f32.mrf.mxu0
      %v450 = vpop.f32.mrf.mxu0
      %v451 = vadd.f32 %v364, %v450
      %v452 = vpop.f32.mrf.mxu0
      %453 = vdwg.mxu0
      %v454 = vmax.f32 %v448, 0.0
      %v455 = vmax.f32 %v451, 0.0
      %v456 = vpack.c.bf16 %v455, %v454
      %v457 = vlaneseq
      %v458 = vshrl.u32 %v457, 7
      %v459 = vsub.s32 2, %v458
      %v460 = vrot.slane %v302, %v459
      %v477 = vunpack.c.l.b16 %v286
      %v478 = vunpack.c.l.b16 %v287
      %v479 = vunpack.c.l.b16 %v288
      %v480 = vunpack.c.l.b16 %v289
      %v481 = vunpack.c.l.b16 %v290
      %v482 = vunpack.c.l.b16 %v291
      %v483 = vunpack.c.l.b16 %v292
      %v484 = vunpack.c.l.b16 %v293
      %v485 = vunpack.c.l.b16 %v294
      %v486 = vunpack.c.l.b16 %v295
      %v487 = vunpack.c.l.b16 %v296
      %v488 = vunpack.c.l.b16 %v297
      %v489 = vunpack.c.l.b16 %v298
      %v490 = vunpack.c.l.b16 %v299
      %v491 = vunpack.c.l.b16 %v300
      %v492 = vunpack.c.l.b16 %v301
      %v493 = vpack.c.b16 %v478, %v477
      %v494 = vpack.c.b16 %v480, %v479
      %v495 = vpack.c.b16 %v482, %v481
      %v496 = vpack.c.b16 %v484, %v483
      %v497 = vpack.c.b16 %v486, %v485
      %v498 = vpack.c.b16 %v488, %v487
      %v499 = vpack.c.b16 %v490, %v489
      %v500 = vpack.c.b16 %v492, %v491
      %509 = vmatprep.subr.bf16.mxu0 0
      %510 = vmatpush1.bf16.msra.mxu0 %v500
      %511 = vmatprep.subr.bf16.mxu0 0
      %512 = vmatpush1.bf16.msra.mxu0 %v499
      %513 = vmatprep.subr.bf16.mxu0 0
      %514 = vmatpush1.bf16.msra.mxu0 %v498
      %515 = vmatprep.subr.bf16.mxu0 0
      %516 = vmatpush1.bf16.msra.mxu0 %v497
      %517 = vmatprep.subr.bf16.mxu0 0
      %518 = vmatpush1.bf16.msra.mxu0 %v496
      %519 = vmatprep.subr.bf16.mxu0 0
      %520 = vmatpush1.bf16.msra.mxu0 %v495
      %521 = vmatprep.subr.bf16.mxu0 0
      %522 = vmatpush1.bf16.msra.mxu0 %v494
      %523 = vmatprep.subr.bf16.mxu0 0
      %524 = vmatpush1.bf16.msra.mxu0 %v493
      %525 = vmatprep.subr.bf16.mxu0 0
      %526 = vmatpush2.bf16.msra.mxu0 0
      %527 = vmatprep.subr.bf16.mxu0 0
      %528 = vmatpush2.bf16.msra.mxu0 0
      %529 = vmatprep.subr.bf16.mxu0 0
      %530 = vmatpush2.bf16.msra.mxu0 0
      %531 = vmatprep.subr.bf16.mxu0 0
      %532 = vmatpush2.bf16.msra.mxu0 0
      %533 = vmatprep.subr.bf16.mxu0 0
      %534 = vmatpush2.bf16.msra.mxu0 0
      %535 = vmatprep.subr.bf16.mxu0 0
      %536 = vmatpush2.bf16.msra.mxu0 0
      %537 = vmatprep.subr.bf16.mxu0 0
      %538 = vmatpush2.bf16.msra.mxu0 0
      %539 = vmatprep.subr.bf16.mxu0 0
      %540 = vmatpush2.bf16.msra.mxu0 0
      %541 = vmatprep.mubr.bf16.mxu0 0
      %542 = vmatmul.mubr.bf16.gmra.mxu0 %v456
      %v543 = vpop.f32.mrf.mxu0
      %v544 = vadd.f32 %v460, %v543
      %v545 = vpop.f32.mrf.mxu0
      %v546 = vpop.f32.mrf.mxu0
      %v547 = vadd.f32 %v460, %v546
      %v548 = vpop.f32.mrf.mxu0
      %549 = vdwg.mxu0
      %v550 = vld [vmem:[%s250] sm:$0xff]
      %v551 = vld [vmem:[%s250 + $0x8] sm:$0xff]
      %v552 = vmul.f32 %v550, 0.5
      %v553 = vmul.f32 %v551, 0.5
      %v554 = vadd.f32 %v544, %v552
      %v555 = vadd.f32 %v547, %v553
      %vm556 = vcmask 31744
      %557 = vst.msk [vmem:[%s256] sm:$0xff] %vm556, %v554
      %558 = vst.msk [vmem:[%s256 + $0x8] sm:$0xff] %vm556, %v555
      %v559 = vmul.f32 %v550, %v550
      %v560 = vmul.f32 %v551, %v551
      %v561 = vmul.f32 %v559, -0.5
      %v562 = vmul.f32 %v560, -0.5
      %v563 = vsel %vm556, %v561, 0.0
      %564 = vadd.xlane.f32.xlu0 %v563
      %v565 = vpop.xlane.xlu0 %564
      %v566 = vsel %vm556, %v562, 0.0
      %567 = vadd.xlane.f32.xlu0 %v566
      %v568 = vpop.xlane.xlu0 %567
      %v569 = vadd.f32 %v565, -0.9031654
      %v570 = vadd.f32 %v568, -0.9031654
      %vm571 = vcmask 7168
      %572 = vst.msk [vmem:[%s262] sm:$0xff] %vm571, %v569
      %573 = vst.msk [vmem:[%s262 + $0x8] sm:$0xff] %vm571, %v570
      %s574 = smul.u32 2, %s17
      %p575 = scmp.lt.s32.totalorder %s574, 7
      %s576 = scalar_select %p575, %s574, 7
      %s577 = smul.addr %s576, 8
      %s578 = scalar_lea.vmem %s4, %s577
      %s579 = smul.u32 2, %s17
      %p580 = scmp.lt.s32.totalorder %s579, 7
      %s581 = scalar_select %p580, %s579, 7
      %s582 = smul.addr %s581, 8
      %s583 = scalar_lea.vmem %s5, %s582
      // Predicated region
      $region37: #{policy_forward.1} parent=35 // pred_check
        %p584 = pneg %p129
      $region38: #{policy_forward.1} parent=35 // pred_check_branch
        %586 = sbr.rel (%p584) target = $region40
      $region39: #{policy_forward.1} parent=35 // pred_region
        %s587 = smul.u32 2, %s17
      $region40: #{policy_forward.1} parent=35 // pred_fallthru
        _
      // Predicated region
      $region41: #{policy_forward.1} parent=35 // pred_check
        %p588 = pneg %p155
      $region42: #{policy_forward.1} parent=35 // pred_check_branch
        %590 = sbr.rel (%p588) target = $region44
      $region43: #{policy_forward.1} parent=35 // pred_region
        %s591 = smul.u32 2, %s17
      $region44: #{policy_forward.1} parent=35 // pred_fallthru
        _
    $region36: #{policy_forward.1} parent=5 // pred_fallthru
      _
    %p592 = scmp.le.s32.totalorder 2, %s12
    // Predicated region
    $region45: #{policy_forward.1} parent=5 // pred_check
      %p593 = pneg %p592
    $region46: #{policy_forward.1} parent=5 // pred_check_branch
      %595 = sbr.rel (%p593) target = $region48
    $region47: #{policy_forward.1} parent=5 // pred_region
      %s596 = ssub.s32 %s12, 2
      // Predicated region
      $region49: #{policy_forward.1} parent=47 // pred_check
        %p597 = pneg %p135
      $region50: #{policy_forward.1} parent=47 // pred_check_branch
        %599 = sbr.rel (%p597) target = $region52
      $region51: #{policy_forward.1} parent=47 // pred_region
        %s600 = smul.u32 2, %s18
        %p601 = scmp.lt.s32.totalorder %s600, 7
        %s602 = scalar_select %p601, %s600, 7
        %s603 = smul.addr %s602, 8
        %s604 = scalar_lea.vmem %s4, %s603
      $region52: #{policy_forward.1} parent=47 // pred_fallthru
        _
      // Predicated region
      $region53: #{policy_forward.1} parent=47 // pred_check
        %p605 = pneg %p161
      $region54: #{policy_forward.1} parent=47 // pred_check_branch
        %607 = sbr.rel (%p605) target = $region56
      $region55: #{policy_forward.1} parent=47 // pred_region
        %s608 = smul.u32 2, %s18
        %p609 = scmp.lt.s32.totalorder %s608, 7
        %s610 = scalar_select %p609, %s608, 7
        %s611 = smul.addr %s610, 8
        %s612 = scalar_lea.vmem %s5, %s611
      $region56: #{policy_forward.1} parent=47 // pred_fallthru
        _
    $region48: #{policy_forward.1} parent=5 // pred_fallthru
      _
  $region6: #{policy_forward.1} parent=0 // loop_footer
    %s16 = sadd.s32 1, %s12
  $region7: #{policy_forward.1} parent=0 // loop_footer_branch
    %11 = sbr.rel target = $region3
  $region8: #{policy_forward.1} parent=0 // loop_exit
    _

</llo_original>
